<compile_context>
chip_gen: v7x
topology: tpu7x:2x2x1
jax: 0.10.0
libtpu: 0.0.40
codegen_flags: <defaults>
</compile_context>

<pallas_src>
import math
import functools

import jax
import jax.numpy as jnp
from jax.experimental import pallas as pl
from jax.experimental.pallas import tpu as pltpu


def _arcface_kernel(x_ref, w_ref, label_ref, xscale_ref, invw_ref, out_ref, *,
                    s, cos_m, sin_m, th, mm, easy_margin, ls_eps,
                    out_features, tile_c):
    """One (tile_b, tile_c) output tile of the ArcFace forward.

    Grid: axis 0 = class tiles (outer), axis 1 = batch tiles (inner), so the
    streamed weight tile is DMA'd once per class tile and reused across all
    batch tiles.
    """
    x = x_ref[...]                       # (tile_b, D)   mxu dtype
    w = w_ref[...]                       # (tile_c, D)   mxu dtype
    labels = label_ref[...]              # (tile_b, 1)   int32
    xscale = xscale_ref[...]             # (tile_b, 1)   f32: s/|x| (ls_eps==0) or 1/|x|
    invw = invw_ref[...]                 # (1, tile_c)   f32: 1/|w|

    # Raw (un-normalized) dot on the MXU, contracting the lane dim of BOTH
    # operands -> no transpose / relayout of the (tile_c, D) weight tile.
    raw = jax.lax.dot_general(
        x, w, dimension_numbers=(((1,), (1,)), ((), ())),
        preferred_element_type=jnp.float32)            # (tile_b, tile_c) f32

    # Target-column mask: shift the label by the class-tile offset instead of
    # offsetting the iota (saves a per-element add).
    col = jax.lax.broadcasted_iota(jnp.int32, raw.shape, 1)
    tgt = labels - pl.program_id(0) * tile_c           # (tile_b, 1)
    is_target = col == tgt                              # (tile_b, tile_c)

    if ls_eps == 0.0:
        # Sparse target fixup: ~2 muls + cmp + select + add per element; the
        # sqrt / margin math only touches a (tile_b, 1) vector.
        scaled = raw * xscale * invw                    # = s * cosine
        s_cos_t = jnp.sum(jnp.where(is_target, scaled, 0.0),
                          axis=-1, keepdims=True)       # (tile_b, 1) = s*cos@target
        cos_t = s_cos_t * (1.0 / s)
        sine_t = jnp.sqrt(jnp.maximum(1.0 - cos_t * cos_t, 0.0))
        phi_t = cos_t * cos_m - sine_t * sin_m
        if easy_margin:
            phi_t = jnp.where(cos_t > 0.0, phi_t, cos_t)
        else:
            phi_t = jnp.where(cos_t > th, phi_t, cos_t - mm)
        delta = (phi_t - cos_t) * s                     # (tile_b, 1)
        out_ref[...] = scaled + jnp.where(is_target, delta, 0.0)
    else:
        # Label smoothing mixes phi into every column -> full-tile epilogue.
        cosine = raw * xscale * invw                    # xscale = 1/|x| here
        sine = jnp.sqrt(jnp.maximum(1.0 - cosine * cosine, 0.0))
        phi = cosine * cos_m - sine * sin_m
        if easy_margin:
            phi = jnp.where(cosine > 0.0, phi, cosine)
        else:
            phi = jnp.where(cosine > th, phi, cosine - mm)
        one_hot = (1.0 - ls_eps) * is_target.astype(jnp.float32) \
            + (ls_eps / out_features)
        out_ref[...] = (one_hot * phi + (1.0 - one_hot) * cosine) * s


def _round_up(v, m):
    return -(-v // m) * m


def _pick_tile_b(b_pad, granule):
    """Largest batch tile <= 512 that divides the (padded) batch."""
    cap = min(512, b_pad)
    for t in range(cap, granule - 1, -granule):
        if b_pad % t == 0:
            return t
    return granule


def _pick_tile_c(c_pad, d, tile_b, w_bytes, budget_bytes=40 * 1024 * 1024):
    """Largest class tile (multiple of 128 dividing c_pad) fitting VMEM.

    Per class column: double-buffered weight row + double-buffered f32 out
    column + f32 matmul-result column.  Budget sized for v7x's 64 MiB VMEM.
    """
    per_c = 2 * d * w_bytes + 3 * tile_b * 4
    cap = max(128, (budget_bytes // max(per_c, 1)) // 128 * 128)
    cap = min(cap, 4096, c_pad)
    for t in range(cap, 127, -128):
        if c_pad % t == 0:
            return t
    return 128


def arcface_forward(x, weight, label, *, s=64.0, m=0.5,
                    easy_margin=False, ls_eps=0.0,
                    mxu_dtype=jnp.bfloat16, tile_b=None, tile_c=None):
    """x: (B, D) f32, weight: (C, D) f32, label: (B,) int -> (B, C) f32."""
    B, D = x.shape
    C, D2 = weight.shape
    assert D == D2

    cos_m = math.cos(m)
    sin_m = math.sin(m)
    th = math.cos(math.pi - m)
    mm = math.sin(math.pi - m) * m

    w_bytes = jnp.dtype(mxu_dtype).itemsize
    # bf16 packs two rows per sublane: keep batch tiles a multiple of 16.
    granule = 16 if w_bytes < 4 else 8

    # Pad ragged dims (instead of a full-array fallback tile that could blow
    # VMEM).  Padded rows are zero -> raw dot is exactly 0 -> padded outputs
    # are harmless and sliced away.
    b_pad = _round_up(B, granule)
    c_pad = _round_up(C, 128)

    xf = x.astype(jnp.float32)
    wf = weight.astype(jnp.float32)
    if b_pad != B:
        xf = jnp.pad(xf, ((0, b_pad - B), (0, 0)))
    if c_pad != C:
        wf = jnp.pad(wf, ((0, c_pad - C), (0, 0)))
    label2d = label.reshape(B, 1).astype(jnp.int32)
    if b_pad != B:
        label2d = jnp.pad(label2d, ((0, b_pad - B), (0, 0)))

    # f32 norms precomputed once in the wrapper (matches F.normalize eps=1e-12;
    # f32-accurate even when the MXU operands are bf16).
    inv_x = jax.lax.rsqrt(
        jnp.maximum(jnp.sum(xf * xf, axis=-1, keepdims=True), 1e-24))      # (b_pad, 1)
    inv_w = jax.lax.rsqrt(
        jnp.maximum(jnp.sum(wf * wf, axis=-1, keepdims=True), 1e-24)).T    # (1, c_pad)
    # Fold the final *s into the x scale on the sparse-fixup (ls_eps==0) path.
    xscale = (s * inv_x) if ls_eps == 0.0 else inv_x

    user_b = tile_b is not None
    user_c = tile_c is not None
    if tile_b is None:
        tile_b = _pick_tile_b(b_pad, granule)
    assert b_pad % tile_b == 0 and (tile_b == b_pad or tile_b % 8 == 0)
    if tile_c is None:
        tile_c = _pick_tile_c(c_pad, D, tile_b, w_bytes)
    assert c_pad % tile_c == 0 and (tile_c == c_pad or tile_c % 128 == 0)

    # v7x shards the parallel grid axes across 2 TensorCores: avoid a (1, 1)
    # grid when the problem is splittable (auto-picked tiles only).
    if (b_pad // tile_b) * (c_pad // tile_c) < 2:
        if not user_c and c_pad >= 256:
            for t in range(tile_c - 128, 127, -128):
                if c_pad % t == 0:
                    tile_c = t
                    break
        elif not user_b and b_pad >= 2 * granule:
            for t in range(tile_b - granule, granule - 1, -granule):
                if b_pad % t == 0:
                    tile_b = t
                    break

    x_in = xf.astype(mxu_dtype)        # bf16 by default: halves HBM traffic
    w_in = wf.astype(mxu_dtype)        # on the streamed weight operand

    kernel = functools.partial(
        _arcface_kernel,
        s=s, cos_m=cos_m, sin_m=sin_m, th=th, mm=mm,
        easy_margin=easy_margin, ls_eps=ls_eps,
        out_features=C, tile_c=tile_c)

    # Class tiles outer, batch tiles inner: the weight block index is constant
    # across the inner axis, so each weight tile is streamed from HBM once.
    grid = (c_pad // tile_c, b_pad // tile_b)

    # VMEM estimate: dbl-buffered weight/out/x tiles + f32 matmul-result
    # buffer + (padded) label / scale vectors.
    est = (2 * tile_c * D * w_bytes
           + 2 * tile_b * tile_c * 4
           + tile_b * tile_c * 4
           + 2 * tile_b * D * w_bytes
           + 4 * (tile_b * 128 + 8 * tile_c) * 4)
    # Cap at 48 MiB so the same configuration is safe on v7x (64 MiB VMEM).
    vmem_limit = int(min(48 * 1024 * 1024, max(2 * est, 32 * 1024 * 1024)))

    # TODO(synk): for very large in_features, add a K-reduction grid axis
    # ("arbitrary", placed last) with an f32 accumulator scratch so tile_c
    # stays decoupled from D.
    out = pl.pallas_call(
        kernel,
        out_shape=jax.ShapeDtypeStruct((b_pad, c_pad), jnp.float32),
        grid_spec=pltpu.PrefetchScalarGridSpec(
            num_scalar_prefetch=0,
            grid=grid,
            in_specs=[
                pl.BlockSpec((tile_b, D), lambda j, i: (i, 0)),   # x rows (re-streamed, tiny)
                pl.BlockSpec((tile_c, D), lambda j, i: (j, 0)),   # weight rows (streamed once)
                pl.BlockSpec((tile_b, 1), lambda j, i: (i, 0)),   # labels
                pl.BlockSpec((tile_b, 1), lambda j, i: (i, 0)),   # s/|x| (or 1/|x|)
                pl.BlockSpec((1, tile_c), lambda j, i: (0, j)),   # 1/|w|
            ],
            out_specs=pl.BlockSpec((tile_b, tile_c), lambda j, i: (i, j)),
        ),
        compiler_params=pltpu.CompilerParams(
            dimension_semantics=("parallel", "parallel"),
            vmem_limit_bytes=vmem_limit),
    )(x_in, w_in, label2d, xscale, inv_w)

    if b_pad != B or c_pad != C:
        out = out[:B, :C]
    return out


def _reference(x, weight, label, *, s=64.0, m=0.5, easy_margin=False,
               ls_eps=0.0, quantize=False):
    """Pure-JAX reference mirroring the PyTorch forward.

    quantize=True matches the kernel's bf16 fast path: the matmul operands are
    bf16-quantized but the norms stay f32 (as precomputed in the wrapper).
    """
    cos_m, sin_m = math.cos(m), math.sin(m)
    th, mm = math.cos(math.pi - m), math.sin(math.pi - m) * m
    inv_x = 1.0 / jnp.maximum(jnp.linalg.norm(x, axis=1, keepdims=True), 1e-12)
    inv_w = 1.0 / jnp.maximum(jnp.linalg.norm(weight, axis=1, keepdims=True), 1e-12)
    if quantize:
        xq = x.astype(jnp.bfloat16).astype(jnp.float32)
        wq = weight.astype(jnp.bfloat16).astype(jnp.float32)
    else:
        xq, wq = x, weight
    cosine = (xq @ wq.T) * inv_x * inv_w.T
    sine = jnp.sqrt(jnp.maximum(1.0 - cosine ** 2, 0.0))
    phi = cosine * cos_m - sine * sin_m
    phi = jnp.where(cosine > 0, phi, cosine) if easy_margin else \
        jnp.where(cosine > th, phi, cosine - mm)
    one_hot = jax.nn.one_hot(label, cosine.shape[1], dtype=jnp.float32)
    if ls_eps > 0:
        one_hot = (1 - ls_eps) * one_hot + ls_eps / cosine.shape[1]
    return (one_hot * phi + (1.0 - one_hot) * cosine) * s


if __name__ == "__main__":
    key = jax.random.PRNGKey(0)
    B, in_features, out_features = 8, 64, 512

    kx, kw, kl = jax.random.split(key, 3)
    x = jax.random.normal(kx, (B, in_features), dtype=jnp.float32)

    # Deterministic xavier_uniform_-style init for weight (out, in).
    bound = math.sqrt(6.0 / (in_features + out_features))
    weight = jax.random.uniform(kw, (out_features, in_features),
                                dtype=jnp.float32, minval=-bound, maxval=bound)

    label = jax.random.randint(kl, (B,), 0, out_features, dtype=jnp.int32)

    # 1) Exact-precision path (f32 MXU operands), forced small class tile so
    #    the multi-tile grid / sparse-fixup path is exercised.
    out_f32 = jax.block_until_ready(
        arcface_forward(x, weight, label, s=64.0, m=0.5,
                        mxu_dtype=jnp.float32, tile_c=128))
    ref = _reference(x, weight, label, s=64.0, m=0.5)
    assert out_f32.shape == (B, out_features)
    assert jnp.allclose(out_f32, ref, atol=1e-3, rtol=1e-4), \
        float(jnp.max(jnp.abs(out_f32 - ref)))

    # 2) Default fast path: bf16 MXU operands, f32 norms, auto tiles
    #    (B padded 8 -> 16).  Reference uses bf16-quantized matmul operands
    #    with f32 norms, matching the kernel.
    out_bf16 = jax.block_until_ready(
        arcface_forward(x, weight, label, s=64.0, m=0.5))
    ref_q = _reference(x, weight, label, s=64.0, m=0.5, quantize=True)
    assert jnp.allclose(out_bf16, ref_q, atol=5e-3, rtol=1e-3), \
        float(jnp.max(jnp.abs(out_bf16 - ref_q)))

    # 3) easy_margin + label-smoothing branch (full-tile epilogue path).
    out_ls = jax.block_until_ready(
        arcface_forward(x, weight, label, s=30.0, m=0.35,
                        easy_margin=True, ls_eps=0.1))
    ref_ls = _reference(x, weight, label, s=30.0, m=0.35,
                        easy_margin=True, ls_eps=0.1, quantize=True)
    assert jnp.allclose(out_ls, ref_ls, atol=5e-3, rtol=1e-3), \
        float(jnp.max(jnp.abs(out_ls - ref_ls)))

    print("KERNEL_OK")
</pallas_src>

<mosaic_0001>
module attributes {stable_mosaic.version = 11 : i64} {
  func.func @_arcface_kernel(%arg0: i32, %arg1: i32, %arg2: memref<8x64xf32, #tpu.memory_space<vmem>>, %arg3: memref<128x64xf32, #tpu.memory_space<vmem>>, %arg4: memref<8x1xi32, #tpu.memory_space<vmem>>, %arg5: memref<8x1xf32, #tpu.memory_space<vmem>>, %arg6: memref<1x128xf32, #tpu.memory_space<vmem>>, %arg7: memref<8x128xf32, #tpu.memory_space<vmem>>) attributes {dimension_semantics = [#tpu.dimension_semantics<parallel>, #tpu.dimension_semantics<parallel>], iteration_bounds = array<i64: 4, 1>, scalar_prefetch = 0 : i64, scratch_operands = 0 : i64, tpu.core_type = #tpu.core_type<tc>, window_params = [{transform_indices = @transform_0, window_bounds = array<i64: 8, 64>}, {transform_indices = @transform_1, window_bounds = array<i64: 128, 64>}, {transform_indices = @transform_2, window_bounds = array<i64: 8, 1>}, {transform_indices = @transform_3, window_bounds = array<i64: 8, 1>}, {transform_indices = @transform_4, window_bounds = array<i64: 1, 128>}, {transform_indices = @transform_5, window_bounds = array<i64: 8, 128>}]} {
    %c0 = arith.constant 0 : index
    %c0_0 = arith.constant 0 : index
    %0 = vector.load %arg2[%c0, %c0_0] : memref<8x64xf32, #tpu.memory_space<vmem>>, vector<8x64xf32>
    %c0_1 = arith.constant 0 : index
    %c0_2 = arith.constant 0 : index
    %1 = vector.load %arg3[%c0_1, %c0_2] : memref<128x64xf32, #tpu.memory_space<vmem>>, vector<128x64xf32>
    %c0_3 = arith.constant 0 : index
    %c0_4 = arith.constant 0 : index
    %2 = vector.load %arg4[%c0_3, %c0_4] : memref<8x1xi32, #tpu.memory_space<vmem>>, vector<8x1xi32>
    %c0_5 = arith.constant 0 : index
    %c0_6 = arith.constant 0 : index
    %3 = vector.load %arg5[%c0_5, %c0_6] : memref<8x1xf32, #tpu.memory_space<vmem>>, vector<8x1xf32>
    %c0_7 = arith.constant 0 : index
    %c0_8 = arith.constant 0 : index
    %4 = vector.load %arg6[%c0_7, %c0_8] : memref<1x128xf32, #tpu.memory_space<vmem>>, vector<1x128xf32>
    %cst = arith.constant dense<0.000000e+00> : vector<8x128xf32>
    %5 = tpu.matmul %0, %1, %cst {dimension_numbers = #tpu.dot_dimension_numbers<[1], [1], [0], [0], [0, 0, 1, 0], [], []>} : vector<8x64xf32>, vector<128x64xf32>, vector<8x128xf32> -> vector<8x128xf32>
    %6 = tpu.iota {dimensions = array<i32: 1>} : vector<8x128xi32>
    %c128_i32 = arith.constant 128 : i32
    %7 = arith.muli %arg0, %c128_i32 : i32
    %8 = vector.broadcast %7 : i32 to vector<8x1xi32>
    %9 = arith.subi %2, %8 : vector<8x1xi32>
    %10 = vector.broadcast %9 : vector<8x1xi32> to vector<8x128xi32>
    %11 = arith.cmpi eq, %6, %10 : vector<8x128xi32>
    %12 = vector.broadcast %3 : vector<8x1xf32> to vector<8x128xf32>
    %13 = arith.mulf %5, %12 : vector<8x128xf32>
    %14 = vector.broadcast %4 : vector<1x128xf32> to vector<8x128xf32>
    %15 = arith.mulf %13, %14 : vector<8x128xf32>
    %cst_9 = arith.constant 0.000000e+00 : f32
    %16 = vector.broadcast %cst_9 : f32 to vector<8x128xf32>
    %17 = arith.select %11, %15, %16 : vector<8x128xi1>, vector<8x128xf32>
    %cst_10 = arith.constant dense<0.000000e+00> : vector<8xf32>
    %18 = vector.multi_reduction <add>, %17, %cst_10 [1] : vector<8x128xf32> to vector<8xf32>
    %19 = vector.shape_cast %18 : vector<8xf32> to vector<8x1xf32>
    %cst_11 = arith.constant 1.562500e-02 : f32
    %20 = vector.broadcast %cst_11 : f32 to vector<8x1xf32>
    %21 = arith.mulf %19, %20 : vector<8x1xf32>
    %22 = arith.mulf %21, %21 : vector<8x1xf32>
    %cst_12 = arith.constant 1.000000e+00 : f32
    %23 = vector.broadcast %cst_12 : f32 to vector<8x1xf32>
    %24 = arith.subf %23, %22 : vector<8x1xf32>
    %cst_13 = arith.constant 0.000000e+00 : f32
    %25 = vector.broadcast %cst_13 : f32 to vector<8x1xf32>
    %26 = arith.maximumf %24, %25 : vector<8x1xf32>
    %27 = math.sqrt %26 : vector<8x1xf32>
    %cst_14 = arith.constant 0.87758255 : f32
    %28 = vector.broadcast %cst_14 : f32 to vector<8x1xf32>
    %29 = arith.mulf %21, %28 : vector<8x1xf32>
    %cst_15 = arith.constant 0.47942555 : f32
    %30 = vector.broadcast %cst_15 : f32 to vector<8x1xf32>
    %31 = arith.mulf %27, %30 : vector<8x1xf32>
    %32 = arith.subf %29, %31 : vector<8x1xf32>
    %cst_16 = arith.constant -0.87758255 : f32
    %33 = vector.broadcast %cst_16 : f32 to vector<8x1xf32>
    %34 = arith.cmpf ogt, %21, %33 : vector<8x1xf32>
    %cst_17 = arith.constant 0.239712775 : f32
    %35 = vector.broadcast %cst_17 : f32 to vector<8x1xf32>
    %36 = arith.subf %21, %35 : vector<8x1xf32>
    %37 = arith.select %34, %32, %36 : vector<8x1xi1>, vector<8x1xf32>
    %38 = arith.subf %37, %21 : vector<8x1xf32>
    %cst_18 = arith.constant 6.400000e+01 : f32
    %39 = vector.broadcast %cst_18 : f32 to vector<8x1xf32>
    %40 = arith.mulf %38, %39 : vector<8x1xf32>
    %cst_19 = arith.constant 0.000000e+00 : f32
    %41 = vector.shape_cast %40 : vector<8x1xf32> to vector<8x1xf32>
    %42 = vector.broadcast %41 : vector<8x1xf32> to vector<8x128xf32>
    %43 = vector.broadcast %cst_19 : f32 to vector<8x128xf32>
    %44 = arith.select %11, %42, %43 : vector<8x128xi1>, vector<8x128xf32>
    %45 = arith.addf %15, %44 : vector<8x128xf32>
    %c0_20 = arith.constant 0 : index
    %c0_21 = arith.constant 0 : index
    %46 = vector.load %arg7[%c0_20, %c0_21] : memref<8x128xf32, #tpu.memory_space<vmem>>, vector<8x128xf32>
    tpu.vector_store %arg7[%c0_20, %c0_21], %45 {strides = array<i32>} : memref<8x128xf32, #tpu.memory_space<vmem>>, vector<8x128xf32>,
    return
  }
  func.func @transform_0(%arg0: i32, %arg1: i32) -> (i32, i32) {
    %c0_i32 = arith.constant 0 : i32
    %c0_i32_0 = arith.constant 0 : i32
    return %arg1, %c0_i32 : i32, i32
  }
  func.func @transform_1(%arg0: i32, %arg1: i32) -> (i32, i32) {
    %c0_i32 = arith.constant 0 : i32
    %c0_i32_0 = arith.constant 0 : i32
    return %arg0, %c0_i32 : i32, i32
  }
  func.func @transform_2(%arg0: i32, %arg1: i32) -> (i32, i32) {
    %c0_i32 = arith.constant 0 : i32
    %c0_i32_0 = arith.constant 0 : i32
    return %arg1, %c0_i32 : i32, i32
  }
  func.func @transform_3(%arg0: i32, %arg1: i32) -> (i32, i32) {
    %c0_i32 = arith.constant 0 : i32
    %c0_i32_0 = arith.constant 0 : i32
    return %arg1, %c0_i32 : i32, i32
  }
  func.func @transform_4(%arg0: i32, %arg1: i32) -> (i32, i32) {
    %c0_i32 = arith.constant 0 : i32
    %c0_i32_0 = arith.constant 0 : i32
    return %c0_i32, %arg0 : i32, i32
  }
  func.func @transform_5(%arg0: i32, %arg1: i32) -> (i32, i32) {
    %c0_i32 = arith.constant 0 : i32
    return %arg1, %arg0 : i32, i32
  }
}

</mosaic_0001>

<llo_original>
// kernel: tpu_custom_call.1
$region0: #{tpu_custom_call.1}
  #allocation0 [shape = 'u32[]', space=smem, size = 0x4, offset = 0x4, fixed_abs, tag = 'smem constant byte address 0x4 - core index']
  #allocation1 [shape = 'u32[144,128]{1,0:T(1,128)}', space=vmem, size = 0x12000, scoped, tag = 'internal scratch']
  %s0 = inlined_call_operand.vmem [shape: f32[8,64], index: 0, kind: input, shape index: {}]
  %s1 = inlined_call_operand.vmem [shape: f32[512,64], index: 1, kind: input, shape index: {}]
  %s2 = inlined_call_operand.vmem [shape: s32[8,1], index: 2, kind: input, shape index: {}]
  %s3 = inlined_call_operand.vmem [shape: f32[8,1], index: 3, kind: input, shape index: {}]
  %s4 = inlined_call_operand.vmem [shape: f32[1,512], index: 4, kind: input, shape index: {}]
  %s5 = inlined_call_operand.hbm [shape: f32[8,512], index: 5, kind: output, shape index: {}]
  %s6 = sld [smem:[#allocation0]]
  $region53: #{tpu_custom_call.1} parent=0
    _
  %s8 = ssub.s32 1, %s6
  %s9 = scalar_select 0, %s8, %s6
  $region1: #{tpu_custom_call.1} parent=0
    #allocation2 [shape = 'u8[8192]{0}', space=vmem, size = 0x2000, scoped, tag = 'output window, operand 0']
    #allocation3 [shape = 's32[2]{0}', space=sflag, size = 0x8, scoped, tag = 'scoped memory for tpu_custom_call.1']
    %10 = vsyncpa [#allocation3], 0
    %s11 = scalar_lea.sflag [#allocation3], 1
    %12 = vsyncpa %s11, 0
    loop: start=0, step=1, limit=6
    $region2: #{tpu_custom_call.1} parent=1 // loop_pre_header
      _
    $region3: #{tpu_custom_call.1} parent=1 // loop_header
      %s14 = sphi 0, %s18
      %p15 = scmp.ge.s32.totalorder %s14, 6
      %s21 = sphi 0, %s33
      %s22 = sphi 0, %s29
      %s23 = sphi 0, %s21
      %s24 = sphi 0, %s22
      %s25 = sphi 0, %s23
      %s26 = sphi 0, %s24
      %s36 = sphi 0, %s38
      %s39 = sphi 0, %s36
      %s40 = sphi 0, %s39
      %s56 = sphi 0, %s40
      %s62 = sphi 0, %s64
      %s65 = sphi 0, %s62
      %s66 = sphi 0, %s65
      %s82 = sphi 0, %s66
      %s88 = sphi 0, %s90
      %s91 = sphi 0, %s88
      %s92 = sphi 0, %s91
      %s108 = sphi 0, %s92
      %s114 = sphi 0, %s116
      %s117 = sphi 0, %s114
      %s118 = sphi 0, %s117
      %s134 = sphi 0, %s118
      %s140 = sphi 0, %s142
      %s143 = sphi 0, %s140
      %s144 = sphi 0, %s143
      %s160 = sphi 0, %s144
      %s168 = sphi 0, %s170
      %s171 = sphi 0, %s168
      %s172 = sphi 0, %s171
      %s188 = sphi 0, %s172
    $region4: #{tpu_custom_call.1} parent=1 // loop_header_branch
      %17 = sbr.rel (%p15) target = $region8
    $region5: #{tpu_custom_call.1} parent=1 // loop_body
      %s19 = ssub.s32 %s14, 1
      %s20 = ssub.s32 %s14, 2
      %s27 = sadd.s32 1, %s22
      %p28 = scmp.ge.s32.totalorder %s27, 1
      %s29 = scalar_select %p28, 0, %s27
      %s30 = sadd.s32 1, %s21
      %s31 = scalar_select %p28, %s30, %s21
      %p32 = scmp.ge.s32.totalorder %s31, 4
      %s33 = scalar_select %p32, 0, %s31
      %s34 = ssub.s32 %s22, %s29
      %p35 = scmp.eq.s32.totalorder %s34, 0
      %s37 = sadd.s32 %s36, 1
      %s38 = scalar_select %p35, %s36, %s37
      %p41 = pneg %p35
      %p42 = scmp.eq.s32.totalorder %s14, 3
      %p43 = por %p41, %p42
      %p44 = scmp.ne.s32.totalorder %s36, %s39
      %p45 = scmp.eq.s32.totalorder %s14, 0
      %p46 = por %p44, %p45
      %p47 = scmp.ne.s32.totalorder %s36, %s39
      %p48 = scmp.eq.s32.totalorder %s19, 3
      %p49 = por %p47, %p48
      %p50 = scmp.ne.s32.totalorder %s39, %s40
      %p51 = scmp.eq.s32.totalorder %s19, 0
      %p52 = por %p50, %p51
      %p53 = scmp.ne.s32.totalorder %s39, %s40
      %p54 = scmp.eq.s32.totalorder %s20, 3
      %p55 = por %p53, %p54
      %p57 = scmp.ne.s32.totalorder %s40, %s56
      %p58 = scmp.eq.s32.totalorder %s20, 0
      %p59 = por %p57, %p58
      %s60 = ssub.s32 %s21, %s33
      %p61 = scmp.eq.s32.totalorder %s60, 0
      %s63 = sadd.s32 %s62, 1
      %s64 = scalar_select %p61, %s62, %s63
      %p67 = pneg %p61
      %p68 = scmp.eq.s32.totalorder %s14, 3
      %p69 = por %p67, %p68
      %p70 = scmp.ne.s32.totalorder %s62, %s65
      %p71 = scmp.eq.s32.totalorder %s14, 0
      %p72 = por %p70, %p71
      %p73 = scmp.ne.s32.totalorder %s62, %s65
      %p74 = scmp.eq.s32.totalorder %s19, 3
      %p75 = por %p73, %p74
      %p76 = scmp.ne.s32.totalorder %s65, %s66
      %p77 = scmp.eq.s32.totalorder %s19, 0
      %p78 = por %p76, %p77
      %p79 = scmp.ne.s32.totalorder %s65, %s66
      %p80 = scmp.eq.s32.totalorder %s20, 3
      %p81 = por %p79, %p80
      %p83 = scmp.ne.s32.totalorder %s66, %s82
      %p84 = scmp.eq.s32.totalorder %s20, 0
      %p85 = por %p83, %p84
      %s86 = ssub.s32 %s22, %s29
      %p87 = scmp.eq.s32.totalorder %s86, 0
      %s89 = sadd.s32 %s88, 1
      %s90 = scalar_select %p87, %s88, %s89
      %p93 = pneg %p87
      %p94 = scmp.eq.s32.totalorder %s14, 3
      %p95 = por %p93, %p94
      %p96 = scmp.ne.s32.totalorder %s88, %s91
      %p97 = scmp.eq.s32.totalorder %s14, 0
      %p98 = por %p96, %p97
      %p99 = scmp.ne.s32.totalorder %s88, %s91
      %p100 = scmp.eq.s32.totalorder %s19, 3
      %p101 = por %p99, %p100
      %p102 = scmp.ne.s32.totalorder %s91, %s92
      %p103 = scmp.eq.s32.totalorder %s19, 0
      %p104 = por %p102, %p103
      %p105 = scmp.ne.s32.totalorder %s91, %s92
      %p106 = scmp.eq.s32.totalorder %s20, 3
      %p107 = por %p105, %p106
      %p109 = scmp.ne.s32.totalorder %s92, %s108
      %p110 = scmp.eq.s32.totalorder %s20, 0
      %p111 = por %p109, %p110
      %s112 = ssub.s32 %s22, %s29
      %p113 = scmp.eq.s32.totalorder %s112, 0
      %s115 = sadd.s32 %s114, 1
      %s116 = scalar_select %p113, %s114, %s115
      %p119 = pneg %p113
      %p120 = scmp.eq.s32.totalorder %s14, 3
      %p121 = por %p119, %p120
      %p122 = scmp.ne.s32.totalorder %s114, %s117
      %p123 = scmp.eq.s32.totalorder %s14, 0
      %p124 = por %p122, %p123
      %p125 = scmp.ne.s32.totalorder %s114, %s117
      %p126 = scmp.eq.s32.totalorder %s19, 3
      %p127 = por %p125, %p126
      %p128 = scmp.ne.s32.totalorder %s117, %s118
      %p129 = scmp.eq.s32.totalorder %s19, 0
      %p130 = por %p128, %p129
      %p131 = scmp.ne.s32.totalorder %s117, %s118
      %p132 = scmp.eq.s32.totalorder %s20, 3
      %p133 = por %p131, %p132
      %p135 = scmp.ne.s32.totalorder %s118, %s134
      %p136 = scmp.eq.s32.totalorder %s20, 0
      %p137 = por %p135, %p136
      %s138 = ssub.s32 %s21, %s33
      %p139 = scmp.eq.s32.totalorder %s138, 0
      %s141 = sadd.s32 %s140, 1
      %s142 = scalar_select %p139, %s140, %s141
      %p145 = pneg %p139
      %p146 = scmp.eq.s32.totalorder %s14, 3
      %p147 = por %p145, %p146
      %p148 = scmp.ne.s32.totalorder %s140, %s143
      %p149 = scmp.eq.s32.totalorder %s14, 0
      %p150 = por %p148, %p149
      %p151 = scmp.ne.s32.totalorder %s140, %s143
      %p152 = scmp.eq.s32.totalorder %s19, 3
      %p153 = por %p151, %p152
      %p154 = scmp.ne.s32.totalorder %s143, %s144
      %p155 = scmp.eq.s32.totalorder %s19, 0
      %p156 = por %p154, %p155
      %p157 = scmp.ne.s32.totalorder %s143, %s144
      %p158 = scmp.eq.s32.totalorder %s20, 3
      %p159 = por %p157, %p158
      %p161 = scmp.ne.s32.totalorder %s144, %s160
      %p162 = scmp.eq.s32.totalorder %s20, 0
      %p163 = por %p161, %p162
      %s164 = ssub.s32 %s22, %s29
      %s165 = ssub.s32 %s21, %s33
      %s166 = sor.u32 %s164, %s165
      %p167 = scmp.eq.s32.totalorder %s166, 0
      %s169 = sadd.s32 %s168, 1
      %s170 = scalar_select %p167, %s168, %s169
      %p173 = pneg %p167
      %p174 = scmp.eq.s32.totalorder %s14, 3
      %p175 = por %p173, %p174
      %p176 = scmp.ne.s32.totalorder %s168, %s171
      %p177 = scmp.eq.s32.totalorder %s14, 0
      %p178 = por %p176, %p177
      %p179 = scmp.ne.s32.totalorder %s168, %s171
      %p180 = scmp.eq.s32.totalorder %s19, 3
      %p181 = por %p179, %p180
      %p182 = scmp.ne.s32.totalorder %s171, %s172
      %p183 = scmp.eq.s32.totalorder %s19, 0
      %p184 = por %p182, %p183
      %p185 = scmp.ne.s32.totalorder %s171, %s172
      %p186 = scmp.eq.s32.totalorder %s20, 3
      %p187 = por %p185, %p186
      %p189 = scmp.ne.s32.totalorder %s172, %s188
      %p190 = scmp.eq.s32.totalorder %s20, 0
      %p191 = por %p189, %p190
      %p192 = scmp.le.s32.totalorder 1, %s14
      %p193 = scmp.lt.s32.totalorder %s14, 5
      %p194 = pnand %p192, %p193
      %p195 = pneg %p194
      // Predicated region
      $region9: #{tpu_custom_call.1} parent=5 // pred_check
        _
      $region10: #{tpu_custom_call.1} parent=5 // pred_check_branch
        %197 = sbr.rel (%p194) target = $region12
      $region11: #{tpu_custom_call.1} parent=5 // pred_region
        %s198 = ssub.s32 %s14, 1
        // Predicated region
        $region13: #{tpu_custom_call.1} parent=11 // pred_check
          %p199 = pneg %p52
        $region14: #{tpu_custom_call.1} parent=11 // pred_check_branch
          %201 = sbr.rel (%p199) target = $region16
        $region15: #{tpu_custom_call.1} parent=11 // pred_region
          %p202 = scmp.lt.s32.totalorder %s24, 0
          %s203 = scalar_select %p202, %s24, 0
          %s204 = smul.addr %s203, 8
          %s205 = scalar_lea.vmem %s0, %s204
        $region16: #{tpu_custom_call.1} parent=11 // pred_fallthru
          _
        // Predicated region
        $region17: #{tpu_custom_call.1} parent=11 // pred_check
          %p206 = pneg %p104
        $region18: #{tpu_custom_call.1} parent=11 // pred_check_branch
          %208 = sbr.rel (%p206) target = $region20
        $region19: #{tpu_custom_call.1} parent=11 // pred_region
          %p209 = scmp.lt.s32.totalorder %s24, 0
          %s210 = scalar_select %p209, %s24, 0
          %s211 = smul.addr %s210, 8
          %s212 = scalar_lea.vmem %s2, %s211
        $region20: #{tpu_custom_call.1} parent=11 // pred_fallthru
          _
        // Predicated region
        $region21: #{tpu_custom_call.1} parent=11 // pred_check
          %p213 = pneg %p130
        $region22: #{tpu_custom_call.1} parent=11 // pred_check_branch
          %215 = sbr.rel (%p213) target = $region24
        $region23: #{tpu_custom_call.1} parent=11 // pred_region
          %p216 = scmp.lt.s32.totalorder %s24, 0
          %s217 = scalar_select %p216, %s24, 0
          %s218 = smul.addr %s217, 8
          %s219 = scalar_lea.vmem %s3, %s218
        $region24: #{tpu_custom_call.1} parent=11 // pred_fallthru
          _
      $region12: #{tpu_custom_call.1} parent=5 // pred_fallthru
        _
      %p220 = scmp.lt.s32.totalorder %s14, 4
      // Predicated region
      $region25: #{tpu_custom_call.1} parent=5 // pred_check
        %p221 = pneg %p220
      $region26: #{tpu_custom_call.1} parent=5 // pred_check_branch
        %223 = sbr.rel (%p221) target = $region28
      $region27: #{tpu_custom_call.1} parent=5 // pred_region
        // Predicated region
        $region29: #{tpu_custom_call.1} parent=27 // pred_check
          %p224 = pneg %p72
        $region30: #{tpu_custom_call.1} parent=27 // pred_check_branch
          %226 = sbr.rel (%p224) target = $region32
        $region31: #{tpu_custom_call.1} parent=27 // pred_region
          %s227 = smul.u32 16, %s21
          %p228 = scmp.lt.s32.totalorder %s227, 63
          %s229 = scalar_select %p228, %s227, 63
          %s230 = smul.addr %s229, 8
          %s231 = scalar_lea.vmem %s1, %s230
          %s232 = smul.u32 16, %s21
        $region32: #{tpu_custom_call.1} parent=27 // pred_fallthru
          _
        // Predicated region
        $region33: #{tpu_custom_call.1} parent=27 // pred_check
          %p233 = pneg %p150
        $region34: #{tpu_custom_call.1} parent=27 // pred_check_branch
          %235 = sbr.rel (%p233) target = $region36
        $region35: #{tpu_custom_call.1} parent=27 // pred_region
          %p236 = scmp.lt.s32.totalorder %s21, 3
          %s237 = scalar_select %p236, %s21, 3
          %s238 = scalar_lea.vmem %s4, %s237
        $region36: #{tpu_custom_call.1} parent=27 // pred_fallthru
          _
      $region28: #{tpu_custom_call.1} parent=5 // pred_fallthru
        _
      %p239 = scmp.le.s32.totalorder 1, %s14
      %p240 = scmp.lt.s32.totalorder %s14, 5
      %p241 = pnand %p239, %p240
      %p242 = pneg %p241
      // Predicated region
      $region37: #{tpu_custom_call.1} parent=5 // pred_check
        _
      $region38: #{tpu_custom_call.1} parent=5 // pred_check_branch
        %244 = sbr.rel (%p241) target = $region40
      $region39: #{tpu_custom_call.1} parent=5 // pred_region
        %s245 = ssub.s32 %s14, 1
        %p246 = scmp.lt.s32.totalorder %s24, 0
        %s247 = scalar_select %p246, %s24, 0
        %s248 = smul.addr %s247, 8
        %s249 = scalar_lea.vmem %s0, %s248
        %p250 = pneg %p52
        %p251 = pneg %p49
        %s252 = smul.u32 16, %s23
        %p253 = scmp.lt.s32.totalorder %s252, 63
        %s254 = scalar_select %p253, %s252, 63
        %s255 = smul.addr %s254, 8
        %s256 = scalar_lea.vmem %s1, %s255
        %p257 = pneg %p78
        %p258 = pneg %p75
        %p259 = scmp.lt.s32.totalorder %s24, 0
        %s260 = scalar_select %p259, %s24, 0
        %s261 = smul.addr %s260, 8
        %s262 = scalar_lea.vmem %s2, %s261
        %p263 = pneg %p104
        %p264 = pneg %p101
        %p265 = scmp.lt.s32.totalorder %s24, 0
        %s266 = scalar_select %p265, %s24, 0
        %s267 = smul.addr %s266, 8
        %s268 = scalar_lea.vmem %s3, %s267
        %p269 = pneg %p130
        %p270 = pneg %p127
        %p271 = scmp.lt.s32.totalorder %s23, 3
        %s272 = scalar_select %p271, %s23, 3
        %s273 = scalar_lea.vmem %s4, %s272
        %p274 = pneg %p156
        %p275 = pneg %p153
        %p276 = pneg %p184
        %p277 = pneg %p181
        %s278 = sand.u32 %s171, 1
        %s279 = scalar_lea.sflag [#allocation3], %s278
        %s280 = sand.u32 %s171, 1
        %s281 = smul.addr %s280, 8
        %s282 = scalar_lea.vmem [#allocation2], %s281
        %p283 = scmp.lt.s32.totalorder %s24, 0
        %s284 = scalar_select %p283, %s24, 0
        %s285 = smul.addr %s284, 8
        %s286 = scalar_lea.vmem %s0, %s285
        %s287 = smul.u32 16, %s23
        %p288 = scmp.lt.s32.totalorder %s287, 63
        %s289 = scalar_select %p288, %s287, 63
        %s290 = smul.addr %s289, 8
        %s291 = scalar_lea.vmem %s1, %s290
        %s292 = smul.u32 16, %s23
        %p293 = scmp.lt.s32.totalorder %s24, 0
        %s294 = scalar_select %p293, %s24, 0
        %s295 = smul.addr %s294, 8
        %s296 = scalar_lea.vmem %s2, %s295
        %p297 = scmp.lt.s32.totalorder %s24, 0
        %s298 = scalar_select %p297, %s24, 0
        %s299 = smul.addr %s298, 8
        %s300 = scalar_lea.vmem %s3, %s299
        %p301 = scmp.lt.s32.totalorder %s23, 3
        %s302 = scalar_select %p301, %s23, 3
        %s303 = scalar_lea.vmem %s4, %s302
        %v304 = vld [vmem:[%s286] sm:$0xff]
        %v305 = vld [vmem:[%s291] sm:$0xff]
        %v306 = vld [vmem:[%s291 + $0x8] sm:$0xff]
        %v307 = vld [vmem:[%s291 + $0x10] sm:$0xff]
        %v308 = vld [vmem:[%s291 + $0x18] sm:$0xff]
        %v309 = vld [vmem:[%s291 + $0x20] sm:$0xff]
        %v310 = vld [vmem:[%s291 + $0x28] sm:$0xff]
        %v311 = vld [vmem:[%s291 + $0x30] sm:$0xff]
        %v312 = vld [vmem:[%s291 + $0x38] sm:$0xff]
        %v313 = vld [vmem:[%s291 + $0x40] sm:$0xff]
        %v314 = vld [vmem:[%s291 + $0x48] sm:$0xff]
        %v315 = vld [vmem:[%s291 + $0x50] sm:$0xff]
        %v316 = vld [vmem:[%s291 + $0x58] sm:$0xff]
        %v317 = vld [vmem:[%s291 + $0x60] sm:$0xff]
        %v318 = vld [vmem:[%s291 + $0x68] sm:$0xff]
        %v319 = vld [vmem:[%s291 + $0x70] sm:$0xff]
        %v320 = vld [vmem:[%s291 + $0x78] sm:$0xff]
        %v321 = vld [vmem:[%s296] sm:$0xff]
        %v322 = vld [vmem:[%s300] sm:$0xff]
        %v323 = vld [vmem:[%s303] sm:$0x1]
        %vm324 = vcmask 523264
        %v326 = vsel %vm324, %v304, 0
        %v329 = vsel %vm324, %v305, 0
        %v332 = vsel %vm324, %v306, 0
        %v335 = vsel %vm324, %v307, 0
        %v338 = vsel %vm324, %v308, 0
        %v341 = vsel %vm324, %v309, 0
        %v344 = vsel %vm324, %v310, 0
        %v347 = vsel %vm324, %v311, 0
        %v350 = vsel %vm324, %v312, 0
        %v353 = vsel %vm324, %v313, 0
        %v356 = vsel %vm324, %v314, 0
        %v359 = vsel %vm324, %v315, 0
        %v362 = vsel %vm324, %v316, 0
        %v365 = vsel %vm324, %v317, 0
        %v368 = vsel %vm324, %v318, 0
        %v371 = vsel %vm324, %v319, 0
        %v374 = vsel %vm324, %v320, 0
        %376 = vmatprep.subr.mxu0 0.0
        %377 = vmatpush1.xpose.msra.mxu0 %v329
        %378 = vmatprep.subr.mxu0 0.0
        %379 = vmatpush1.xpose.msra.mxu0 %v332
        %380 = vmatprep.subr.mxu0 0.0
        %381 = vmatpush1.xpose.msra.mxu0 %v335
        %382 = vmatprep.subr.mxu0 0.0
        %383 = vmatpush1.xpose.msra.mxu0 %v338
        %384 = vmatprep.subr.mxu0 0.0
        %385 = vmatpush1.xpose.msra.mxu0 %v341
        %386 = vmatprep.subr.mxu0 0.0
        %387 = vmatpush1.xpose.msra.mxu0 %v344
        %388 = vmatprep.subr.mxu0 0.0
        %389 = vmatpush1.xpose.msra.mxu0 %v347
        %390 = vmatprep.subr.mxu0 0.0
        %391 = vmatpush1.xpose.msra.mxu0 %v350
        %392 = vmatprep.subr.mxu0 0.0
        %393 = vmatpush1.xpose.msra.mxu0 %v353
        %394 = vmatprep.subr.mxu0 0.0
        %395 = vmatpush1.xpose.msra.mxu0 %v356
        %396 = vmatprep.subr.mxu0 0.0
        %397 = vmatpush1.xpose.msra.mxu0 %v359
        %398 = vmatprep.subr.mxu0 0.0
        %399 = vmatpush1.xpose.msra.mxu0 %v362
        %400 = vmatprep.subr.mxu0 0.0
        %401 = vmatpush1.xpose.msra.mxu0 %v365
        %402 = vmatprep.subr.mxu0 0.0
        %403 = vmatpush1.xpose.msra.mxu0 %v368
        %404 = vmatprep.subr.mxu0 0.0
        %405 = vmatpush1.xpose.msra.mxu0 %v371
        %406 = vmatprep.subr.mxu0 0.0
        %407 = vmatpush1.xpose.msra.mxu0 %v374
        %408 = vmatprep.subr.mxu0 0.0
        %409 = vmatpush1.xpose.msra.mxu0 0.0
        %410 = vmatprep.subr.mxu0 0.0
        %411 = vmatpush1.xpose.msra.mxu0 0.0
        %412 = vmatprep.subr.mxu0 0.0
        %413 = vmatpush1.xpose.msra.mxu0 0.0
        %414 = vmatprep.subr.mxu0 0.0
        %415 = vmatpush1.xpose.msra.mxu0 0.0
        %416 = vmatprep.subr.mxu0 0.0
        %417 = vmatpush1.xpose.msra.mxu0 0.0
        %418 = vmatprep.subr.mxu0 0.0
        %419 = vmatpush1.xpose.msra.mxu0 0.0
        %420 = vmatprep.subr.mxu0 0.0
        %421 = vmatpush1.xpose.msra.mxu0 0.0
        %422 = vmatprep.subr.mxu0 0.0
        %423 = vmatpush1.xpose.msra.mxu0 0.0
        %424 = vmatprep.subr.mxu0 0.0
        %425 = vmatpush1.xpose.msra.mxu0 0.0
        %426 = vmatprep.subr.mxu0 0.0
        %427 = vmatpush1.xpose.msra.mxu0 0.0
        %428 = vmatprep.subr.mxu0 0.0
        %429 = vmatpush1.xpose.msra.mxu0 0.0
        %430 = vmatprep.subr.mxu0 0.0
        %431 = vmatpush1.xpose.msra.mxu0 0.0
        %432 = vmatprep.subr.mxu0 0.0
        %433 = vmatpush1.xpose.msra.mxu0 0.0
        %434 = vmatprep.subr.mxu0 0.0
        %435 = vmatpush1.xpose.msra.mxu0 0.0
        %436 = vmatprep.subr.mxu0 0.0
        %437 = vmatpush1.xpose.msra.mxu0 0.0
        %438 = vmatprep.subr.mxu0 0.0
        %439 = vmatpush1.xpose.msra.mxu0 0.0
        %440 = vmatprep.mubr.f32.mxu0 0.0
        %441 = vmatmul.mubr.f32.gmra.mrb[0].mxu0 %v326
        %v442 = vpop.f32.mrb[0].mxu0
        %v443 = vadd.f32 0.0, %v442
        %v444 = vpop.f32.mrb[0].mxu0
        %445 = vdwg.mxu0
        %v446 = vlaneseq
        %v447 = vand.u32 %v446, 127
        %s448 = smul.u32 %s23, 128
        %v449 = vstv %s448
        %v450 = vsub.s32 %v321, %v449
        %451 = vset.pattern.permute.xlu0 0
        %452 = vperm.xlu0 %451, %v450
        %v453 = vpop.permute.xlu0 %452
        %vm454 = vcmp.eq.s32.totalorder %v447, %v453
        %456 = vset.pattern.permute.xlu0 0
        %457 = vperm.xlu0 %456, %v322
        %v458 = vpop.permute.xlu0 %457
        %v460 = vmul.f32 %v443, %v458
        %v462 = vlaneseq
        %v463 = vshrl.u32 %v462, 7
        %v464 = vsub.s32 0, %v463
        %v465 = vrot.slane %v323, %v464
        %v467 = vmul.f32 %v460, %v465
        %v468 = vsel %vm454, %v467, 0.0
        %469 = vadd.xlane.f32.xlu0 %v468
        %v470 = vpop.xlane.xlu0 %469
        %v471 = vmul.f32 %v470, 0.015625
        %v472 = vmul.f32 %v471, %v471
        %v473 = vsub.f32 1.0, %v472
        %v474 = vmax.f32 %v473, 0.0
        %v475 = vrsqrt.pop %v474
        %v476 = vmul.f32 %v474, %v475
        %vm477 = vcmp.eq.f32.partialorder %v474, inf
        %v478 = vsel %vm477, %v474, %v476
        %vm479 = vcmp.eq.f32.partialorder %v474, 0.0
        %v480 = vand.u32 %v474, 2147483648
        %v481 = vsel %vm479, %v480, %v478
        %v482 = vmul.f32 %v471, 0.87758255
        %v483 = vmul.f32 %v481, 0.47942555
        %v484 = vsub.f32 %v482, %v483
        %vm485 = vcmp.gt.f32.partialorder %v471, -0.87758255
        %v486 = vsub.f32 %v471, 0.23971277
        %v487 = vsel %vm485, %v484, %v486
        %v488 = vsub.f32 %v487, %v471
        %v489 = vmul.f32 %v488, 64.0
        %v490 = vsel %vm454, %v489, 0.0
        %v491 = vadd.f32 %v467, %v490
        %492 = vst [vmem:[%s282] sm:$0xff] %v491
        %s493 = sand.u32 %s171, 1
        %s494 = scalar_lea.sflag [#allocation3], %s493
        %s495 = sand.u32 %s171, 1
        %s496 = smul.addr %s495, 8
        %s497 = scalar_lea.vmem [#allocation2], %s496
        // Predicated region
        $region41: #{tpu_custom_call.1} parent=39 // pred_check
          %p498 = pneg %p181
        $region42: #{tpu_custom_call.1} parent=39 // pred_check_branch
          %500 = sbr.rel (%p498) target = $region44
        $region43: #{tpu_custom_call.1} parent=39 // pred_region
          %s502 = ssub.s32 128, 128
          %503 = vsyncadd %s494, %s502
          %s504 = smul.addr %s24, 4
          %s505 = sadd.s32 %s23, %s504
          %s506 = smul.addr %s505, 128
          %s507 = scalar_lea.hbm %s5, %s506
          %s509 = sshll.u32 %s497, 4
          %s510 = int_to_ptr.vmem [resolvable:$true] %s509
          %512 = dma.vmem_to_hbm [thread:$0]  %s510, 128, %s507, %s494
        $region44: #{tpu_custom_call.1} parent=39 // pred_fallthru
          _
      $region40: #{tpu_custom_call.1} parent=5 // pred_fallthru
        _
      %p513 = scmp.le.s32.totalorder 2, %s14
      // Predicated region
      $region45: #{tpu_custom_call.1} parent=5 // pred_check
        %p514 = pneg %p513
      $region46: #{tpu_custom_call.1} parent=5 // pred_check_branch
        %516 = sbr.rel (%p514) target = $region48
      $region47: #{tpu_custom_call.1} parent=5 // pred_region
        %s517 = ssub.s32 %s14, 2
        // Predicated region
        $region49: #{tpu_custom_call.1} parent=47 // pred_check
          %p518 = pneg %p187
        $region50: #{tpu_custom_call.1} parent=47 // pred_check_branch
          %520 = sbr.rel (%p518) target = $region52
        $region51: #{tpu_custom_call.1} parent=47 // pred_region
          %s521 = sand.u32 %s172, 1
          %s522 = scalar_lea.sflag [#allocation3], %s521
          %s523 = sand.u32 %s172, 1
          %s524 = smul.addr %s523, 8
          %s525 = scalar_lea.vmem [#allocation2], %s524
          %526 = dma.done %s522, 128
        $region52: #{tpu_custom_call.1} parent=47 // pred_fallthru
          _
      $region48: #{tpu_custom_call.1} parent=5 // pred_fallthru
        _
    $region6: #{tpu_custom_call.1} parent=1 // loop_footer
      %s18 = sadd.s32 1, %s14
    $region7: #{tpu_custom_call.1} parent=1 // loop_footer_branch
      %13 = sbr.rel target = $region3
    $region8: #{tpu_custom_call.1} parent=1 // loop_exit
      _
    %527 = vsyncpa [#allocation3], 1
    %s528 = scalar_lea.sflag [#allocation3], 1
    %529 = vsyncpa %s528, 1

</llo_original>
